<compile_context>
chip_gen: v6e
topology: v6e:2x2x1
jax: 0.10.0
libtpu: 0.0.40
codegen_flags: <defaults>
</compile_context>

<pallas_src>
import jax
import jax.numpy as jnp
from jax.experimental import pallas as pl
from jax.experimental.pallas import tpu as pltpu


def _crelu_kernel(x_ref, o_ref):
    # Pure VPU elementwise work; bound entirely by HBM traffic.
    o_ref[...] = jnp.maximum(x_ref[...], 0.0)


def _round_up(a: int, b: int) -> int:
    return -(-a // b) * b


def _choose_tiling(m: int):
    """Pick (lanes, block_rows, grid, padded_rows) for a flat f32 array of m elems."""
    LANE_Q = 128                      # hardware lane width
    SUB_Q = 8                         # sublane quantum
    MAX_LANES = 1024                  # wide lane-dense stores (unmasked vst)
    TARGET_BLOCK_BYTES = 2 * 1024 * 1024   # ~2 MiB per buffer

    # Widest lane dim the data can reasonably fill (always a multiple of 128).
    lanes = LANE_Q
    while lanes < MAX_LANES and m >= 2 * lanes * SUB_Q:
        lanes *= 2

    rows = -(-m // lanes)
    block_rows = max(SUB_Q, TARGET_BLOCK_BYTES // (4 * lanes))
    block_rows = min(block_rows, _round_up(rows, SUB_Q))
    block_rows = _round_up(block_rows, SUB_Q)

    grid = -(-rows // block_rows)
    padded_rows = grid * block_rows
    return lanes, block_rows, grid, padded_rows


@jax.jit
def complex_relu(x: jax.Array) -> jax.Array:
    """Pallas TPU implementation of relu(x.real) + 1j * relu(x.imag)."""
    orig_shape = x.shape
    n = x.size

    # Planar f32 slab: [real..., imag...].  Elementwise max(x, 0) on this slab
    # is exactly relu(real) / relu(imag).  (real/imag of complex64 are already
    # float32 — no astype needed.)
    flat = jnp.concatenate([jnp.real(x).reshape(-1), jnp.imag(x).reshape(-1)])
    m = flat.size  # 2 * n

    lanes, block_rows, grid, padded_rows = _choose_tiling(m)
    total = padded_rows * lanes
    if total != m:
        flat = jnp.pad(flat, (0, total - m))   # single pad on the fused slab
    slab = flat.reshape(padded_rows, lanes)

    out = pl.pallas_call(
        _crelu_kernel,
        out_shape=jax.ShapeDtypeStruct(slab.shape, slab.dtype),
        grid=(grid,),
        in_specs=[pl.BlockSpec((block_rows, lanes), lambda i: (i, 0))],
        out_specs=pl.BlockSpec((block_rows, lanes), lambda i: (i, 0)),
        compiler_params=pltpu.CompilerParams(
            dimension_semantics=("parallel",),
        ),
        cost_estimate=pl.CostEstimate(
            flops=total,
            transcendentals=0,
            bytes_accessed=2 * total * 4,   # one read + one write of the slab
        ),
    )(slab)

    out_flat = out.reshape(-1)[:m]
    out_re = out_flat[:n].reshape(orig_shape)
    out_im = out_flat[n:].reshape(orig_shape)
    return jax.lax.complex(out_re, out_im)


if __name__ == "__main__":
    key = jax.random.PRNGKey(0)
    k_re, k_im = jax.random.split(key)
    shape = (2, 4, 16, 16)  # NCHW, matching the PyTorch convention
    x = jax.lax.complex(
        jax.random.normal(k_re, shape, dtype=jnp.float32),
        jax.random.normal(k_im, shape, dtype=jnp.float32),
    )

    y = complex_relu(x)
    y = jax.block_until_ready(y)

    # Reference check in plain JAX.
    ref = jax.lax.complex(jnp.maximum(jnp.real(x), 0.0),
                          jnp.maximum(jnp.imag(x), 0.0))
    assert y.dtype == jnp.complex64
    assert y.shape == shape
    assert jnp.allclose(y, ref), "mismatch vs reference"
    print("KERNEL_OK")
</pallas_src>

<mosaic_0001>
module attributes {stable_mosaic.version = 11 : i64} {
  func.func @_crelu_kernel(%arg0: i32, %arg1: memref<8x512xf32, #tpu.memory_space<vmem>>, %arg2: memref<8x512xf32, #tpu.memory_space<vmem>>) attributes {dimension_semantics = [#tpu.dimension_semantics<parallel>], iteration_bounds = array<i64: 1>, scalar_prefetch = 0 : i64, scratch_operands = 0 : i64, tpu.core_type = #tpu.core_type<tc>, window_params = [{transform_indices = @transform_0, window_bounds = array<i64: 8, 512>}, {transform_indices = @transform_1, window_bounds = array<i64: 8, 512>}]} {
    %c0 = arith.constant 0 : index
    %c0_0 = arith.constant 0 : index
    %0 = vector.load %arg1[%c0, %c0_0] : memref<8x512xf32, #tpu.memory_space<vmem>>, vector<8x512xf32>
    %cst = arith.constant 0.000000e+00 : f32
    %1 = vector.broadcast %cst : f32 to vector<8x512xf32>
    %2 = arith.maximumf %0, %1 : vector<8x512xf32>
    %c0_1 = arith.constant 0 : index
    %c0_2 = arith.constant 0 : index
    %3 = vector.load %arg2[%c0_1, %c0_2] : memref<8x512xf32, #tpu.memory_space<vmem>>, vector<8x512xf32>
    tpu.vector_store %arg2[%c0_1, %c0_2], %2 {strides = array<i32>} : memref<8x512xf32, #tpu.memory_space<vmem>>, vector<8x512xf32>,
    return
  }
  func.func @transform_0(%arg0: i32) -> (i32, i32) {
    %c0_i32 = arith.constant 0 : i32
    %c0_i32_0 = arith.constant 0 : i32
    return %arg0, %c0_i32 : i32, i32
  }
  func.func @transform_1(%arg0: i32) -> (i32, i32) {
    %c0_i32 = arith.constant 0 : i32
    %c0_i32_0 = arith.constant 0 : i32
    return %arg0, %c0_i32 : i32, i32
  }
}

</mosaic_0001>

<llo_original>
// kernel: custom-call.1
$region0: #{custom-call.1}
  %s0 = inlined_call_operand.hbm [shape: c64[2,4,16,16], index: 0, kind: input, shape index: {}]
  %s1 = inlined_call_operand.vmem [shape: f32[2,4,16,16], index: 1, kind: output, shape index: {}]
  %s2 = scalar_lea.hbm %s0, 2048
  $region1: #{custom-call.1} parent=0
    #allocation0 [shape = 's32[1]{0}', space=sflag, size = 0x4, scoped, tag = 'scoped memory for custom-call.1']
    %3 = vsyncpa [#allocation0], 0
    %s4 = sshll.u32 %s1, 4
    %s5 = int_to_ptr.vmem [resolvable:$true] %s4
    %7 = dma.hbm_to_vmem [thread:$0]  %s2, 2048, %s5, [#allocation0]
    %8 = dma.done [#allocation0], 2048
    %9 = vsyncpa [#allocation0], 1

// kernel: custom-call
$region0: #{custom-call}
  %s0 = inlined_call_operand.hbm [shape: c64[2,4,16,16], index: 0, kind: input, shape index: {}]
  %s1 = inlined_call_operand.vmem [shape: f32[2,4,16,16], index: 1, kind: output, shape index: {}]
  $region1: #{custom-call} parent=0
    #allocation0 [shape = 's32[1]{0}', space=sflag, size = 0x4, scoped, tag = 'scoped memory for custom-call']
    %2 = vsyncpa [#allocation0], 0
    %s3 = sshll.u32 %s1, 4
    %s4 = int_to_ptr.vmem [resolvable:$true] %s3
    %6 = dma.hbm_to_vmem [thread:$0]  %s0, 2048, %s4, [#allocation0]
    %7 = dma.done [#allocation0], 2048
    %8 = vsyncpa [#allocation0], 1

// kernel: custom-call.2
$region0: #{custom-call.2}
  %s0 = inlined_call_operand.vmem [shape: f32[2,4,16,16], index: 0, kind: input, shape index: {}]
  %s1 = inlined_call_operand.vmem [shape: f32[2,4,16,16], index: 1, kind: input, shape index: {}]
  %s2 = inlined_call_operand.hbm [shape: c64[2,4,16,16], index: 2, kind: output, shape index: {}]
  %s3 = scalar_lea.hbm %s2, 2048
  $region1: #{custom-call.2} parent=0
    #allocation0 [shape = 's32[1]{0}', space=sflag, size = 0x4, scoped, tag = 'scoped memory for custom-call.2']
    %4 = vsyncpa [#allocation0], 0
    %s5 = sshll.u32 %s0, 4
    %s6 = int_to_ptr.vmem [resolvable:$true] %s5
    %8 = dma.vmem_to_hbm [thread:$0]  %s6, 2048, %s2, [#allocation0]
    %9 = dma.done [#allocation0], 2048
    %10 = vsyncpa [#allocation0], 1
  $region2: #{custom-call.2} parent=0
    #allocation1 [shape = 's32[1]{0}', space=sflag, size = 0x4, scoped, tag = 'scoped memory for custom-call.2']
    %11 = vsyncpa [#allocation1], 0
    %s12 = sshll.u32 %s1, 4
    %s13 = int_to_ptr.vmem [resolvable:$true] %s12
    %15 = dma.vmem_to_hbm [thread:$0]  %s13, 2048, %s3, [#allocation1]
    %16 = dma.done [#allocation1], 2048
    %17 = vsyncpa [#allocation1], 1

// kernel: complex_relu.1
$region0: #{complex_relu.1}
  #allocation0 [shape = 'u32[]', space=smem, size = 0x4, offset = 0x4, fixed_abs, tag = 'smem constant byte address 0x4 - core index']
  #allocation1 [shape = 'u32[144,128]{1,0:T(1,128)}', space=vmem, size = 0x12000, scoped, tag = 'internal scratch']
  %s0 = inlined_call_operand.vmem [shape: f32[8,512], index: 0, kind: input, shape index: {}]
  %s1 = inlined_call_operand.vmem [shape: f32[8,512], index: 1, kind: output, shape index: {}]
  %s2 = sld [smem:[#allocation0]]
  $region14: #{complex_relu.1} parent=0
    _
  %s4 = ssub.s32 1, %s2
  %s5 = scalar_select 0, %s4, %s2
  // Predicated region
  $region2: #{complex_relu.1} parent=0 // pred_check
    _
  $region3: #{complex_relu.1} parent=0 // pred_check_branch
    %7 = sbr.rel (0) target = $region5
  $region4: #{complex_relu.1} parent=0 // pred_region
    _
  $region5: #{complex_relu.1} parent=0 // pred_fallthru
    _
  %v8 = vld [vmem:[%s0] sm:$0xff]
  %v9 = vld [vmem:[%s0 + $0x8] sm:$0xff]
  %v10 = vld [vmem:[%s0 + $0x10] sm:$0xff]
  %v11 = vld [vmem:[%s0 + $0x18] sm:$0xff]
  %v12 = vmax.f32 %v8, 0.0
  %v13 = vmax.f32 %v9, 0.0
  %v14 = vmax.f32 %v10, 0.0
  %v15 = vmax.f32 %v11, 0.0
  %16 = vst [vmem:[%s1] sm:$0xff] %v12
  %17 = vst [vmem:[%s1 + $0x8] sm:$0xff] %v13
  %18 = vst [vmem:[%s1 + $0x10] sm:$0xff] %v14
  %19 = vst [vmem:[%s1 + $0x18] sm:$0xff] %v15
  // Predicated region
  $region6: #{complex_relu.1} parent=0 // pred_check
    _
  $region7: #{complex_relu.1} parent=0 // pred_check_branch
    %21 = sbr.rel (0) target = $region9
  $region8: #{complex_relu.1} parent=0 // pred_region
    _
  $region9: #{complex_relu.1} parent=0 // pred_fallthru
    _
  // Predicated region
  $region10: #{complex_relu.1} parent=0 // pred_check
    _
  $region11: #{complex_relu.1} parent=0 // pred_check_branch
    %23 = sbr.rel (0) target = $region13
  $region12: #{complex_relu.1} parent=0 // pred_region
    _
  $region13: #{complex_relu.1} parent=0 // pred_fallthru
    _

</llo_original>
